<compile_context>
chip_gen: v6e
topology: v6e:2x2x1
jax: 0.10.0
libtpu: 0.0.40
codegen_flags: <defaults>
</compile_context>

<pallas_src>
import jax
import jax.numpy as jnp
from jax.experimental import pallas as pl
from jax.experimental.pallas import tpu as pltpu


# ---------------------------------------------------------------------------
# Kernel 1: nearest-neighbor upsample (integer scale) + elementwise add
# ---------------------------------------------------------------------------
def _upsample_add_kernel(small_ref, rep_ref, big_ref, out_ref):
    # small_ref: (Rb, w)       low-res rows
    # rep_ref:   (w, W)        0/1 width-replication matrix (W = sw * w)
    # big_ref:   (Rb, sh, W)   high-res rows grouped by their source row
    # out_ref:   (Rb, sh, W)
    up = jnp.dot(small_ref[...], rep_ref[...],
                 preferred_element_type=jnp.float32)          # (Rb, W), exact
    out_ref[...] = big_ref[...] + up[:, None, :].astype(big_ref.dtype)


def upsample_add(x, y, *, row_block=1024):
    """x + nearest_upsample(y) with integer scale factors; NCHW layout."""
    N, C, H, W = x.shape
    n2, c2, h, w = y.shape
    assert (n2, c2) == (N, C) and H % h == 0 and W % w == 0, (
        "nearest upsample path requires integer H/W ratios")
    sh, sw = H // h, W // w

    M = N * C * h
    big_r = x.reshape(M, sh, W)            # row-major view, lane dim = W
    small_r = y.reshape(M, w)
    # rep[j, k] = 1 iff k // sw == j  ->  (small @ rep)[:, k] = small[:, k//sw]
    rep = (jnp.arange(W)[None, :] // sw ==
           jnp.arange(w)[:, None]).astype(x.dtype)

    Rb = M if M <= row_block else row_block           # multiple of 8 or full
    grid = (pl.cdiv(M, Rb),)

    out_r = pl.pallas_call(
        _upsample_add_kernel,
        out_shape=jax.ShapeDtypeStruct((M, sh, W), x.dtype),
        grid=grid,
        in_specs=[
            pl.BlockSpec((Rb, w), lambda i: (i, 0)),
            pl.BlockSpec((w, W), lambda i: (0, 0)),
            pl.BlockSpec((Rb, sh, W), lambda i: (i, 0, 0)),
        ],
        out_specs=pl.BlockSpec((Rb, sh, W), lambda i: (i, 0, 0)),
        compiler_params=pltpu.CompilerParams(
            dimension_semantics=("parallel",),
            vmem_limit_bytes=32 * 1024 * 1024,
        ),
    )(small_r, rep, big_r)
    return out_r.reshape(N, C, H, W)


# ---------------------------------------------------------------------------
# Kernel 2: 3x3 convolution, padding=1 (channels-last, 9 shifted MXU matmuls)
# ---------------------------------------------------------------------------
def _conv3x3_kernel(xpad_ref, w_ref, b_ref, out_ref):
    # xpad_ref: (1, H+2, W+2, Cin)  zero-padded NHWC image
    # w_ref:    (3, 3, Cin, Cout)   HWIO weights
    # b_ref:    (1, Cout)
    # out_ref:  (1, H*W, Cout)
    _, Hp, Wp, Cin = xpad_ref.shape
    H, W = Hp - 2, Wp - 2
    Cout = w_ref.shape[-1]

    xp = xpad_ref[0]                                   # (H+2, W+2, Cin)
    acc = jnp.zeros((H * W, Cout), jnp.float32)
    for dh in range(3):
        for dw in range(3):
            win = xp[dh:dh + H, dw:dw + W, :].reshape(H * W, Cin)
            acc = acc + jnp.dot(win, w_ref[dh, dw],
                                preferred_element_type=jnp.float32)
    acc = acc + b_ref[...].astype(jnp.float32)
    out_ref[...] = acc[None].astype(out_ref.dtype)


def conv3x3_same(s, weight, bias):
    """PyTorch-equivalent Conv2d(C, C, kernel_size=3, padding=1). NCHW in/out."""
    N, C, H, W = s.shape
    Cout = weight.shape[0]
    s_nhwc = jnp.transpose(s, (0, 2, 3, 1))                    # layout glue
    s_pad = jnp.pad(s_nhwc, ((0, 0), (1, 1), (1, 1), (0, 0)))
    w_hwio = jnp.transpose(weight, (2, 3, 1, 0))               # OIHW -> HWIO
    b2 = bias.reshape(1, Cout)

    out_flat = pl.pallas_call(
        _conv3x3_kernel,
        out_shape=jax.ShapeDtypeStruct((N, H * W, Cout), s.dtype),
        grid=(N,),
        in_specs=[
            pl.BlockSpec((1, H + 2, W + 2, C), lambda n: (n, 0, 0, 0)),
            pl.BlockSpec((3, 3, C, Cout), lambda n: (0, 0, 0, 0)),
            pl.BlockSpec((1, Cout), lambda n: (0, 0)),
        ],
        out_specs=pl.BlockSpec((1, H * W, Cout), lambda n: (n, 0, 0)),
        compiler_params=pltpu.CompilerParams(
            dimension_semantics=("parallel",),
            vmem_limit_bytes=32 * 1024 * 1024,
        ),
    )(s_pad, w_hwio, b2)

    out_nhwc = out_flat.reshape(N, H, W, Cout)
    return jnp.transpose(out_nhwc, (0, 3, 1, 2))


# ---------------------------------------------------------------------------
# Module forward
# ---------------------------------------------------------------------------
def upsample_add_conv_forward(x, y, weight, bias):
    """UpsampleAddConv.forward: (x + upsample(y)) then 3x3 same conv."""
    if y is not None:
        x = upsample_add(x, y)
    return conv3x3_same(x, weight, bias)


# ---------------------------------------------------------------------------
# Pure-JAX reference
# ---------------------------------------------------------------------------
def reference_forward(x, y, weight, bias):
    if y is not None:
        sh = x.shape[2] // y.shape[2]
        sw = x.shape[3] // y.shape[3]
        up = jnp.repeat(jnp.repeat(y, sh, axis=2), sw, axis=3)
        x = x + up
    out = jax.lax.conv_general_dilated(
        x, weight, window_strides=(1, 1), padding=((1, 1), (1, 1)),
        dimension_numbers=("NCHW", "OIHW", "NCHW"))
    return out + bias[None, :, None, None]


if __name__ == "__main__":
    key = jax.random.PRNGKey(0)
    N, C = 2, 4            # batch, filters
    H, W = 16, 16          # high-res (x)
    hy, wy = 8, 8          # low-res (y), upsample_scale = 2

    k1, k2, k3, k4 = jax.random.split(key, 4)
    x = jax.random.normal(k1, (N, C, H, W), dtype=jnp.float32)
    y = jax.random.normal(k2, (N, C, hy, wy), dtype=jnp.float32)
    weight = jax.random.normal(k3, (C, C, 3, 3), dtype=jnp.float32) * 0.1
    bias = jax.random.normal(k4, (C,), dtype=jnp.float32) * 0.1

    out = jax.block_until_ready(upsample_add_conv_forward(x, y, weight, bias))
    ref = reference_forward(x, y, weight, bias)
    assert out.shape == (N, C, H, W)
    assert jnp.allclose(out, ref, rtol=1e-4, atol=1e-4), "mismatch vs reference (with y)"

    # y = None path (conv only), as in the PyTorch module's signature.
    out2 = jax.block_until_ready(upsample_add_conv_forward(x, None, weight, bias))
    ref2 = reference_forward(x, None, weight, bias)
    assert jnp.allclose(out2, ref2, rtol=1e-4, atol=1e-4), "mismatch vs reference (y=None)"

    print("KERNEL_OK")
</pallas_src>

<mosaic_0001>
module attributes {stable_mosaic.version = 11 : i64} {
  func.func @_upsample_add_kernel(%arg0: i32, %arg1: memref<64x8xf32, #tpu.memory_space<vmem>>, %arg2: memref<8x16xf32, #tpu.memory_space<vmem>>, %arg3: memref<64x2x16xf32, #tpu.memory_space<vmem>>, %arg4: memref<64x2x16xf32, #tpu.memory_space<vmem>>) attributes {dimension_semantics = [#tpu.dimension_semantics<parallel>], iteration_bounds = array<i64: 1>, scalar_prefetch = 0 : i64, scratch_operands = 0 : i64, tpu.core_type = #tpu.core_type<tc>, window_params = [{transform_indices = @transform_0, window_bounds = array<i64: 64, 8>}, {pipeline_mode = #tpu.pipeline_mode<synchronous>, transform_indices = @transform_1, window_bounds = array<i64: 8, 16>}, {transform_indices = @transform_2, window_bounds = array<i64: 64, 2, 16>}, {transform_indices = @transform_3, window_bounds = array<i64: 64, 2, 16>}]} {
    %c0 = arith.constant 0 : index
    %c0_0 = arith.constant 0 : index
    %0 = vector.load %arg1[%c0, %c0_0] : memref<64x8xf32, #tpu.memory_space<vmem>>, vector<64x8xf32>
    %c0_1 = arith.constant 0 : index
    %c0_2 = arith.constant 0 : index
    %1 = vector.load %arg2[%c0_1, %c0_2] : memref<8x16xf32, #tpu.memory_space<vmem>>, vector<8x16xf32>
    %cst = arith.constant dense<0.000000e+00> : vector<64x16xf32>
    %2 = tpu.matmul %0, %1, %cst {dimension_numbers = #tpu.dot_dimension_numbers<[1], [0], [0], [1], [0, 0, 1, 1], [], []>} : vector<64x8xf32>, vector<8x16xf32>, vector<64x16xf32> -> vector<64x16xf32>
    %c0_3 = arith.constant 0 : index
    %c0_4 = arith.constant 0 : index
    %c0_5 = arith.constant 0 : index
    %3 = vector.load %arg3[%c0_3, %c0_4, %c0_5] : memref<64x2x16xf32, #tpu.memory_space<vmem>>, vector<64x2x16xf32>
    %4 = vector.shape_cast %2 : vector<64x16xf32> to vector<64x1x16xf32>
    %5 = vector.broadcast %4 : vector<64x1x16xf32> to vector<64x2x16xf32>
    %6 = arith.addf %3, %5 : vector<64x2x16xf32>
    %c0_6 = arith.constant 0 : index
    %c0_7 = arith.constant 0 : index
    %c0_8 = arith.constant 0 : index
    %7 = vector.load %arg4[%c0_6, %c0_7, %c0_8] : memref<64x2x16xf32, #tpu.memory_space<vmem>>, vector<64x2x16xf32>
    tpu.vector_store %arg4[%c0_6, %c0_7, %c0_8], %6 {strides = array<i32>} : memref<64x2x16xf32, #tpu.memory_space<vmem>>, vector<64x2x16xf32>,
    return
  }
  func.func @transform_0(%arg0: i32) -> (i32, i32) {
    %c0_i32 = arith.constant 0 : i32
    %c0_i32_0 = arith.constant 0 : i32
    return %arg0, %c0_i32 : i32, i32
  }
  func.func @transform_1(%arg0: i32) -> (i32, i32) {
    %c0_i32 = arith.constant 0 : i32
    %c0_i32_0 = arith.constant 0 : i32
    %c0_i32_1 = arith.constant 0 : i32
    return %c0_i32, %c0_i32_0 : i32, i32
  }
  func.func @transform_2(%arg0: i32) -> (i32, i32, i32) {
    %c0_i32 = arith.constant 0 : i32
    %c0_i32_0 = arith.constant 0 : i32
    %c0_i32_1 = arith.constant 0 : i32
    return %arg0, %c0_i32, %c0_i32_0 : i32, i32, i32
  }
  func.func @transform_3(%arg0: i32) -> (i32, i32, i32) {
    %c0_i32 = arith.constant 0 : i32
    %c0_i32_0 = arith.constant 0 : i32
    %c0_i32_1 = arith.constant 0 : i32
    return %arg0, %c0_i32, %c0_i32_0 : i32, i32, i32
  }
}

</mosaic_0001>

<llo_original>
// kernel: tpu_custom_call.1
$region0: #{tpu_custom_call.1}
  #allocation0 [shape = 'u32[]', space=smem, size = 0x4, offset = 0x4, fixed_abs, tag = 'smem constant byte address 0x4 - core index']
  #allocation1 [shape = 'u32[144,128]{1,0:T(1,128)}', space=vmem, size = 0x12000, scoped, tag = 'internal scratch']
  %s0 = inlined_call_operand.vmem [shape: f32[64,8], index: 0, kind: input, shape index: {}]
  %s1 = inlined_call_operand.vmem [shape: f32[8,16], index: 1, kind: input, shape index: {}]
  %s2 = inlined_call_operand.vmem [shape: f32[64,2,16], index: 2, kind: input, shape index: {}]
  %s3 = inlined_call_operand.vmem [shape: f32[64,2,16], index: 3, kind: output, shape index: {}]
  %s4 = sld [smem:[#allocation0]]
  $region22: #{tpu_custom_call.1} parent=0
    _
  %s6 = ssub.s32 1, %s4
  %s7 = scalar_select 0, %s6, %s4
  // Predicated region
  $region2: #{tpu_custom_call.1} parent=0 // pred_check
    _
  $region3: #{tpu_custom_call.1} parent=0 // pred_check_branch
    %9 = sbr.rel (0) target = $region5
  $region4: #{tpu_custom_call.1} parent=0 // pred_region
    _
  $region5: #{tpu_custom_call.1} parent=0 // pred_fallthru
    _
  // Predicated region
  $region6: #{tpu_custom_call.1} parent=0 // pred_check
    _
  $region7: #{tpu_custom_call.1} parent=0 // pred_check_branch
    %11 = sbr.rel (0) target = $region9
  $region8: #{tpu_custom_call.1} parent=0 // pred_region
    _
  $region9: #{tpu_custom_call.1} parent=0 // pred_fallthru
    _
  // Predicated region
  $region10: #{tpu_custom_call.1} parent=0 // pred_check
    _
  $region11: #{tpu_custom_call.1} parent=0 // pred_check_branch
    %13 = sbr.rel (0) target = $region13
  $region12: #{tpu_custom_call.1} parent=0 // pred_region
    _
  $region13: #{tpu_custom_call.1} parent=0 // pred_fallthru
    _
  %v14 = vld [vmem:[%s0] sm:$0xff]
  %v15 = vld [vmem:[%s0 + $0x8] sm:$0xff]
  %v16 = vld [vmem:[%s0 + $0x10] sm:$0xff]
  %v17 = vld [vmem:[%s0 + $0x18] sm:$0xff]
  %v18 = vld [vmem:[%s0 + $0x20] sm:$0xff]
  %v19 = vld [vmem:[%s0 + $0x28] sm:$0xff]
  %v20 = vld [vmem:[%s0 + $0x30] sm:$0xff]
  %v21 = vld [vmem:[%s0 + $0x38] sm:$0xff]
  %v22 = vld [vmem:[%s1] sm:$0xff]
  %vm23 = vcmask 64512
  %v25 = vsel %vm23, %v14, 0
  %v28 = vsel %vm23, %v15, 0
  %v31 = vsel %vm23, %v16, 0
  %v34 = vsel %vm23, %v17, 0
  %v37 = vsel %vm23, %v18, 0
  %v40 = vsel %vm23, %v19, 0
  %v43 = vsel %vm23, %v20, 0
  %v46 = vsel %vm23, %v21, 0
  %48 = vmatprep.subr.mxu0 0.0
  %49 = vmatpush1.msra.mxu0 0.0
  %50 = vmatprep.subr.mxu0 0.0
  %51 = vmatpush1.msra.mxu0 0.0
  %52 = vmatprep.subr.mxu0 0.0
  %53 = vmatpush1.msra.mxu0 0.0
  %54 = vmatprep.subr.mxu0 0.0
  %55 = vmatpush1.msra.mxu0 0.0
  %56 = vmatprep.subr.mxu0 0.0
  %57 = vmatpush1.msra.mxu0 0.0
  %58 = vmatprep.subr.mxu0 0.0
  %59 = vmatpush1.msra.mxu0 0.0
  %60 = vmatprep.subr.mxu0 0.0
  %61 = vmatpush1.msra.mxu0 0.0
  %62 = vmatprep.subr.mxu0 0.0
  %63 = vmatpush1.msra.mxu0 0.0
  %64 = vmatprep.subr.mxu0 0.0
  %65 = vmatpush1.msra.mxu0 0.0
  %66 = vmatprep.subr.mxu0 0.0
  %67 = vmatpush1.msra.mxu0 0.0
  %68 = vmatprep.subr.mxu0 0.0
  %69 = vmatpush1.msra.mxu0 0.0
  %70 = vmatprep.subr.mxu0 0.0
  %71 = vmatpush1.msra.mxu0 0.0
  %72 = vmatprep.subr.mxu0 0.0
  %73 = vmatpush1.msra.mxu0 0.0
  %74 = vmatprep.subr.mxu0 0.0
  %75 = vmatpush1.msra.mxu0 0.0
  %76 = vmatprep.subr.mxu0 0.0
  %77 = vmatpush1.msra.mxu0 0.0
  %78 = vmatprep.subr.mxu0 0.0
  %79 = vmatpush1.msra.mxu0 %v22
  %80 = vmatprep.subr.mxu0 0.0
  %81 = vmatpush2.msra.mxu0 0.0
  %82 = vmatprep.subr.mxu0 0.0
  %83 = vmatpush2.msra.mxu0 0.0
  %84 = vmatprep.subr.mxu0 0.0
  %85 = vmatpush2.msra.mxu0 0.0
  %86 = vmatprep.subr.mxu0 0.0
  %87 = vmatpush2.msra.mxu0 0.0
  %88 = vmatprep.subr.mxu0 0.0
  %89 = vmatpush2.msra.mxu0 0.0
  %90 = vmatprep.subr.mxu0 0.0
  %91 = vmatpush2.msra.mxu0 0.0
  %92 = vmatprep.subr.mxu0 0.0
  %93 = vmatpush2.msra.mxu0 0.0
  %94 = vmatprep.subr.mxu0 0.0
  %95 = vmatpush2.msra.mxu0 0.0
  %96 = vmatprep.subr.mxu0 0.0
  %97 = vmatpush2.msra.mxu0 0.0
  %98 = vmatprep.subr.mxu0 0.0
  %99 = vmatpush2.msra.mxu0 0.0
  %100 = vmatprep.subr.mxu0 0.0
  %101 = vmatpush2.msra.mxu0 0.0
  %102 = vmatprep.subr.mxu0 0.0
  %103 = vmatpush2.msra.mxu0 0.0
  %104 = vmatprep.subr.mxu0 0.0
  %105 = vmatpush2.msra.mxu0 0.0
  %106 = vmatprep.subr.mxu0 0.0
  %107 = vmatpush2.msra.mxu0 0.0
  %108 = vmatprep.subr.mxu0 0.0
  %109 = vmatpush2.msra.mxu0 0.0
  %110 = vmatprep.subr.mxu0 0.0
  %111 = vmatpush2.msra.mxu0 0.0
  %112 = vmatprep.mubr.f32.mxu0 0.0
  %113 = vmatmul.mubr.f32.gmra.mxu0 %v25
  %v114 = vpop.f32.mrf.mxu0
  %v115 = vadd.f32 0.0, %v114
  %v116 = vpop.f32.mrf.mxu0
  %117 = vmatprep.mubr.f32.mxu0 0.0
  %118 = vmatmul.mubr.f32.gmra.mxu0 %v28
  %v119 = vpop.f32.mrf.mxu0
  %v120 = vadd.f32 0.0, %v119
  %v121 = vpop.f32.mrf.mxu0
  %122 = vmatprep.mubr.f32.mxu0 0.0
  %123 = vmatmul.mubr.f32.gmra.mxu0 %v31
  %v124 = vpop.f32.mrf.mxu0
  %v125 = vadd.f32 0.0, %v124
  %v126 = vpop.f32.mrf.mxu0
  %127 = vmatprep.mubr.f32.mxu0 0.0
  %128 = vmatmul.mubr.f32.gmra.mxu0 %v34
  %v129 = vpop.f32.mrf.mxu0
  %v130 = vadd.f32 0.0, %v129
  %v131 = vpop.f32.mrf.mxu0
  %132 = vmatprep.mubr.f32.mxu0 0.0
  %133 = vmatmul.mubr.f32.gmra.mxu0 %v37
  %v134 = vpop.f32.mrf.mxu0
  %v135 = vadd.f32 0.0, %v134
  %v136 = vpop.f32.mrf.mxu0
  %137 = vmatprep.mubr.f32.mxu0 0.0
  %138 = vmatmul.mubr.f32.gmra.mxu0 %v40
  %v139 = vpop.f32.mrf.mxu0
  %v140 = vadd.f32 0.0, %v139
  %v141 = vpop.f32.mrf.mxu0
  %142 = vmatprep.mubr.f32.mxu0 0.0
  %143 = vmatmul.mubr.f32.gmra.mxu0 %v43
  %v144 = vpop.f32.mrf.mxu0
  %v145 = vadd.f32 0.0, %v144
  %v146 = vpop.f32.mrf.mxu0
  %147 = vmatprep.mubr.f32.mxu0 0.0
  %148 = vmatmul.mubr.f32.gmra.mxu0 %v46
  %v149 = vpop.f32.mrf.mxu0
  %v150 = vadd.f32 0.0, %v149
  %v151 = vpop.f32.mrf.mxu0
  %152 = vdwg.mxu0
  %v153 = vld [vmem:[%s2] sm:$0x3]
  %v154 = vld [vmem:[%s2 + $0x2] sm:$0x3]
  %v155 = vld [vmem:[%s2 + $0x4] sm:$0x3]
  %v156 = vld [vmem:[%s2 + $0x6] sm:$0x3]
  %v157 = vld [vmem:[%s2 + $0x8] sm:$0x3]
  %v158 = vld [vmem:[%s2 + $0xa] sm:$0x3]
  %v159 = vld [vmem:[%s2 + $0xc] sm:$0x3]
  %v160 = vld [vmem:[%s2 + $0xe] sm:$0x3]
  %v161 = vld [vmem:[%s2 + $0x10] sm:$0x3]
  %v162 = vld [vmem:[%s2 + $0x12] sm:$0x3]
  %v163 = vld [vmem:[%s2 + $0x14] sm:$0x3]
  %v164 = vld [vmem:[%s2 + $0x16] sm:$0x3]
  %v165 = vld [vmem:[%s2 + $0x18] sm:$0x3]
  %v166 = vld [vmem:[%s2 + $0x1a] sm:$0x3]
  %v167 = vld [vmem:[%s2 + $0x1c] sm:$0x3]
  %v168 = vld [vmem:[%s2 + $0x1e] sm:$0x3]
  %v169 = vld [vmem:[%s2 + $0x20] sm:$0x3]
  %v170 = vld [vmem:[%s2 + $0x22] sm:$0x3]
  %v171 = vld [vmem:[%s2 + $0x24] sm:$0x3]
  %v172 = vld [vmem:[%s2 + $0x26] sm:$0x3]
  %v173 = vld [vmem:[%s2 + $0x28] sm:$0x3]
  %v174 = vld [vmem:[%s2 + $0x2a] sm:$0x3]
  %v175 = vld [vmem:[%s2 + $0x2c] sm:$0x3]
  %v176 = vld [vmem:[%s2 + $0x2e] sm:$0x3]
  %v177 = vld [vmem:[%s2 + $0x30] sm:$0x3]
  %v178 = vld [vmem:[%s2 + $0x32] sm:$0x3]
  %v179 = vld [vmem:[%s2 + $0x34] sm:$0x3]
  %v180 = vld [vmem:[%s2 + $0x36] sm:$0x3]
  %v181 = vld [vmem:[%s2 + $0x38] sm:$0x3]
  %v182 = vld [vmem:[%s2 + $0x3a] sm:$0x3]
  %v183 = vld [vmem:[%s2 + $0x3c] sm:$0x3]
  %v184 = vld [vmem:[%s2 + $0x3e] sm:$0x3]
  %v185 = vld [vmem:[%s2 + $0x40] sm:$0x3]
  %v186 = vld [vmem:[%s2 + $0x42] sm:$0x3]
  %v187 = vld [vmem:[%s2 + $0x44] sm:$0x3]
  %v188 = vld [vmem:[%s2 + $0x46] sm:$0x3]
  %v189 = vld [vmem:[%s2 + $0x48] sm:$0x3]
  %v190 = vld [vmem:[%s2 + $0x4a] sm:$0x3]
  %v191 = vld [vmem:[%s2 + $0x4c] sm:$0x3]
  %v192 = vld [vmem:[%s2 + $0x4e] sm:$0x3]
  %v193 = vld [vmem:[%s2 + $0x50] sm:$0x3]
  %v194 = vld [vmem:[%s2 + $0x52] sm:$0x3]
  %v195 = vld [vmem:[%s2 + $0x54] sm:$0x3]
  %v196 = vld [vmem:[%s2 + $0x56] sm:$0x3]
  %v197 = vld [vmem:[%s2 + $0x58] sm:$0x3]
  %v198 = vld [vmem:[%s2 + $0x5a] sm:$0x3]
  %v199 = vld [vmem:[%s2 + $0x5c] sm:$0x3]
  %v200 = vld [vmem:[%s2 + $0x5e] sm:$0x3]
  %v201 = vld [vmem:[%s2 + $0x60] sm:$0x3]
  %v202 = vld [vmem:[%s2 + $0x62] sm:$0x3]
  %v203 = vld [vmem:[%s2 + $0x64] sm:$0x3]
  %v204 = vld [vmem:[%s2 + $0x66] sm:$0x3]
  %v205 = vld [vmem:[%s2 + $0x68] sm:$0x3]
  %v206 = vld [vmem:[%s2 + $0x6a] sm:$0x3]
  %v207 = vld [vmem:[%s2 + $0x6c] sm:$0x3]
  %v208 = vld [vmem:[%s2 + $0x6e] sm:$0x3]
  %v209 = vld [vmem:[%s2 + $0x70] sm:$0x3]
  %v210 = vld [vmem:[%s2 + $0x72] sm:$0x3]
  %v211 = vld [vmem:[%s2 + $0x74] sm:$0x3]
  %v212 = vld [vmem:[%s2 + $0x76] sm:$0x3]
  %v213 = vld [vmem:[%s2 + $0x78] sm:$0x3]
  %v214 = vld [vmem:[%s2 + $0x7a] sm:$0x3]
  %v215 = vld [vmem:[%s2 + $0x7c] sm:$0x3]
  %v216 = vld [vmem:[%s2 + $0x7e] sm:$0x3]
  %v225 = vcombine.high %v115, %v115
  %v227 = vunpack.c.l.s4 1966171168
  %v228 = vunpack.c.0.s8 %v227
  %v229 = vlaneseq
  %v230 = vshrl.u32 %v229, 7
  %v231 = vsub.s32 %v228, %v230
  %v232 = vrot.slane %v115, %v231
  %v234 = vunpack.c.l.s4 1966171168
  %v235 = vunpack.c.0.s8 %v234
  %v236 = vlaneseq
  %v237 = vshrl.u32 %v236, 7
  %v238 = vsub.s32 %v235, %v237
  %v239 = vrot.slane %v225, %v238
  %v240 = vcombine.high %v232, %v232
  %v241 = vcombine.high %v239, %v239
  %v243 = vunpack.c.l.s4 1966171168
  %v244 = vunpack.c.0.s8 %v243
  %v245 = vlaneseq
  %v246 = vshrl.u32 %v245, 7
  %v247 = vsub.s32 %v244, %v246
  %v248 = vrot.slane %v232, %v247
  %v250 = vunpack.c.l.s4 1966171168
  %v251 = vunpack.c.0.s8 %v250
  %v252 = vlaneseq
  %v253 = vshrl.u32 %v252, 7
  %v254 = vsub.s32 %v251, %v253
  %v255 = vrot.slane %v239, %v254
  %v257 = vunpack.c.l.s4 1966171168
  %v258 = vunpack.c.0.s8 %v257
  %v259 = vlaneseq
  %v260 = vshrl.u32 %v259, 7
  %v261 = vsub.s32 %v258, %v260
  %v262 = vrot.slane %v240, %v261
  %v264 = vunpack.c.l.s4 1966171168
  %v265 = vunpack.c.0.s8 %v264
  %v266 = vlaneseq
  %v267 = vshrl.u32 %v266, 7
  %v268 = vsub.s32 %v265, %v267
  %v269 = vrot.slane %v241, %v268
  %v270 = vcombine.high %v248, %v248
  %v271 = vcombine.high %v255, %v255
  %v272 = vcombine.high %v262, %v262
  %v273 = vcombine.high %v269, %v269
  %v274 = vcombine.high %v120, %v120
  %v276 = vunpack.c.l.s4 1966171168
  %v277 = vunpack.c.0.s8 %v276
  %v278 = vlaneseq
  %v279 = vshrl.u32 %v278, 7
  %v280 = vsub.s32 %v277, %v279
  %v281 = vrot.slane %v120, %v280
  %v283 = vunpack.c.l.s4 1966171168
  %v284 = vunpack.c.0.s8 %v283
  %v285 = vlaneseq
  %v286 = vshrl.u32 %v285, 7
  %v287 = vsub.s32 %v284, %v286
  %v288 = vrot.slane %v274, %v287
  %v289 = vcombine.high %v281, %v281
  %v290 = vcombine.high %v288, %v288
  %v292 = vunpack.c.l.s4 1966171168
  %v293 = vunpack.c.0.s8 %v292
  %v294 = vlaneseq
  %v295 = vshrl.u32 %v294, 7
  %v296 = vsub.s32 %v293, %v295
  %v297 = vrot.slane %v281, %v296
  %v299 = vunpack.c.l.s4 1966171168
  %v300 = vunpack.c.0.s8 %v299
  %v301 = vlaneseq
  %v302 = vshrl.u32 %v301, 7
  %v303 = vsub.s32 %v300, %v302
  %v304 = vrot.slane %v288, %v303
  %v306 = vunpack.c.l.s4 1966171168
  %v307 = vunpack.c.0.s8 %v306
  %v308 = vlaneseq
  %v309 = vshrl.u32 %v308, 7
  %v310 = vsub.s32 %v307, %v309
  %v311 = vrot.slane %v289, %v310
  %v313 = vunpack.c.l.s4 1966171168
  %v314 = vunpack.c.0.s8 %v313
  %v315 = vlaneseq
  %v316 = vshrl.u32 %v315, 7
  %v317 = vsub.s32 %v314, %v316
  %v318 = vrot.slane %v290, %v317
  %v319 = vcombine.high %v297, %v297
  %v320 = vcombine.high %v304, %v304
  %v321 = vcombine.high %v311, %v311
  %v322 = vcombine.high %v318, %v318
  %v323 = vcombine.high %v125, %v125
  %v325 = vunpack.c.l.s4 1966171168
  %v326 = vunpack.c.0.s8 %v325
  %v327 = vlaneseq
  %v328 = vshrl.u32 %v327, 7
  %v329 = vsub.s32 %v326, %v328
  %v330 = vrot.slane %v125, %v329
  %v332 = vunpack.c.l.s4 1966171168
  %v333 = vunpack.c.0.s8 %v332
  %v334 = vlaneseq
  %v335 = vshrl.u32 %v334, 7
  %v336 = vsub.s32 %v333, %v335
  %v337 = vrot.slane %v323, %v336
  %v338 = vcombine.high %v330, %v330
  %v339 = vcombine.high %v337, %v337
  %v341 = vunpack.c.l.s4 1966171168
  %v342 = vunpack.c.0.s8 %v341
  %v343 = vlaneseq
  %v344 = vshrl.u32 %v343, 7
  %v345 = vsub.s32 %v342, %v344
  %v346 = vrot.slane %v330, %v345
  %v348 = vunpack.c.l.s4 1966171168
  %v349 = vunpack.c.0.s8 %v348
  %v350 = vlaneseq
  %v351 = vshrl.u32 %v350, 7
  %v352 = vsub.s32 %v349, %v351
  %v353 = vrot.slane %v337, %v352
  %v355 = vunpack.c.l.s4 1966171168
  %v356 = vunpack.c.0.s8 %v355
  %v357 = vlaneseq
  %v358 = vshrl.u32 %v357, 7
  %v359 = vsub.s32 %v356, %v358
  %v360 = vrot.slane %v338, %v359
  %v362 = vunpack.c.l.s4 1966171168
  %v363 = vunpack.c.0.s8 %v362
  %v364 = vlaneseq
  %v365 = vshrl.u32 %v364, 7
  %v366 = vsub.s32 %v363, %v365
  %v367 = vrot.slane %v339, %v366
  %v368 = vcombine.high %v346, %v346
  %v369 = vcombine.high %v353, %v353
  %v370 = vcombine.high %v360, %v360
  %v371 = vcombine.high %v367, %v367
  %v372 = vcombine.high %v130, %v130
  %v374 = vunpack.c.l.s4 1966171168
  %v375 = vunpack.c.0.s8 %v374
  %v376 = vlaneseq
  %v377 = vshrl.u32 %v376, 7
  %v378 = vsub.s32 %v375, %v377
  %v379 = vrot.slane %v130, %v378
  %v381 = vunpack.c.l.s4 1966171168
  %v382 = vunpack.c.0.s8 %v381
  %v383 = vlaneseq
  %v384 = vshrl.u32 %v383, 7
  %v385 = vsub.s32 %v382, %v384
  %v386 = vrot.slane %v372, %v385
  %v387 = vcombine.high %v379, %v379
  %v388 = vcombine.high %v386, %v386
  %v390 = vunpack.c.l.s4 1966171168
  %v391 = vunpack.c.0.s8 %v390
  %v392 = vlaneseq
  %v393 = vshrl.u32 %v392, 7
  %v394 = vsub.s32 %v391, %v393
  %v395 = vrot.slane %v379, %v394
  %v397 = vunpack.c.l.s4 1966171168
  %v398 = vunpack.c.0.s8 %v397
  %v399 = vlaneseq
  %v400 = vshrl.u32 %v399, 7
  %v401 = vsub.s32 %v398, %v400
  %v402 = vrot.slane %v386, %v401
  %v404 = vunpack.c.l.s4 1966171168
  %v405 = vunpack.c.0.s8 %v404
  %v406 = vlaneseq
  %v407 = vshrl.u32 %v406, 7
  %v408 = vsub.s32 %v405, %v407
  %v409 = vrot.slane %v387, %v408
  %v411 = vunpack.c.l.s4 1966171168
  %v412 = vunpack.c.0.s8 %v411
  %v413 = vlaneseq
  %v414 = vshrl.u32 %v413, 7
  %v415 = vsub.s32 %v412, %v414
  %v416 = vrot.slane %v388, %v415
  %v417 = vcombine.high %v395, %v395
  %v418 = vcombine.high %v402, %v402
  %v419 = vcombine.high %v409, %v409
  %v420 = vcombine.high %v416, %v416
  %v421 = vcombine.high %v135, %v135
  %v423 = vunpack.c.l.s4 1966171168
  %v424 = vunpack.c.0.s8 %v423
  %v425 = vlaneseq
  %v426 = vshrl.u32 %v425, 7
  %v427 = vsub.s32 %v424, %v426
  %v428 = vrot.slane %v135, %v427
  %v430 = vunpack.c.l.s4 1966171168
  %v431 = vunpack.c.0.s8 %v430
  %v432 = vlaneseq
  %v433 = vshrl.u32 %v432, 7
  %v434 = vsub.s32 %v431, %v433
  %v435 = vrot.slane %v421, %v434
  %v436 = vcombine.high %v428, %v428
  %v437 = vcombine.high %v435, %v435
  %v439 = vunpack.c.l.s4 1966171168
  %v440 = vunpack.c.0.s8 %v439
  %v441 = vlaneseq
  %v442 = vshrl.u32 %v441, 7
  %v443 = vsub.s32 %v440, %v442
  %v444 = vrot.slane %v428, %v443
  %v446 = vunpack.c.l.s4 1966171168
  %v447 = vunpack.c.0.s8 %v446
  %v448 = vlaneseq
  %v449 = vshrl.u32 %v448, 7
  %v450 = vsub.s32 %v447, %v449
  %v451 = vrot.slane %v435, %v450
  %v453 = vunpack.c.l.s4 1966171168
  %v454 = vunpack.c.0.s8 %v453
  %v455 = vlaneseq
  %v456 = vshrl.u32 %v455, 7
  %v457 = vsub.s32 %v454, %v456
  %v458 = vrot.slane %v436, %v457
  %v460 = vunpack.c.l.s4 1966171168
  %v461 = vunpack.c.0.s8 %v460
  %v462 = vlaneseq
  %v463 = vshrl.u32 %v462, 7
  %v464 = vsub.s32 %v461, %v463
  %v465 = vrot.slane %v437, %v464
  %v466 = vcombine.high %v444, %v444
  %v467 = vcombine.high %v451, %v451
  %v468 = vcombine.high %v458, %v458
  %v469 = vcombine.high %v465, %v465
  %v470 = vcombine.high %v140, %v140
  %v472 = vunpack.c.l.s4 1966171168
  %v473 = vunpack.c.0.s8 %v472
  %v474 = vlaneseq
  %v475 = vshrl.u32 %v474, 7
  %v476 = vsub.s32 %v473, %v475
  %v477 = vrot.slane %v140, %v476
  %v479 = vunpack.c.l.s4 1966171168
  %v480 = vunpack.c.0.s8 %v479
  %v481 = vlaneseq
  %v482 = vshrl.u32 %v481, 7
  %v483 = vsub.s32 %v480, %v482
  %v484 = vrot.slane %v470, %v483
  %v485 = vcombine.high %v477, %v477
  %v486 = vcombine.high %v484, %v484
  %v488 = vunpack.c.l.s4 1966171168
  %v489 = vunpack.c.0.s8 %v488
  %v490 = vlaneseq
  %v491 = vshrl.u32 %v490, 7
  %v492 = vsub.s32 %v489, %v491
  %v493 = vrot.slane %v477, %v492
  %v495 = vunpack.c.l.s4 1966171168
  %v496 = vunpack.c.0.s8 %v495
  %v497 = vlaneseq
  %v498 = vshrl.u32 %v497, 7
  %v499 = vsub.s32 %v496, %v498
  %v500 = vrot.slane %v484, %v499
  %v502 = vunpack.c.l.s4 1966171168
  %v503 = vunpack.c.0.s8 %v502
  %v504 = vlaneseq
  %v505 = vshrl.u32 %v504, 7
  %v506 = vsub.s32 %v503, %v505
  %v507 = vrot.slane %v485, %v506
  %v509 = vunpack.c.l.s4 1966171168
  %v510 = vunpack.c.0.s8 %v509
  %v511 = vlaneseq
  %v512 = vshrl.u32 %v511, 7
  %v513 = vsub.s32 %v510, %v512
  %v514 = vrot.slane %v486, %v513
  %v515 = vcombine.high %v493, %v493
  %v516 = vcombine.high %v500, %v500
  %v517 = vcombine.high %v507, %v507
  %v518 = vcombine.high %v514, %v514
  %v519 = vcombine.high %v145, %v145
  %v521 = vunpack.c.l.s4 1966171168
  %v522 = vunpack.c.0.s8 %v521
  %v523 = vlaneseq
  %v524 = vshrl.u32 %v523, 7
  %v525 = vsub.s32 %v522, %v524
  %v526 = vrot.slane %v145, %v525
  %v528 = vunpack.c.l.s4 1966171168
  %v529 = vunpack.c.0.s8 %v528
  %v530 = vlaneseq
  %v531 = vshrl.u32 %v530, 7
  %v532 = vsub.s32 %v529, %v531
  %v533 = vrot.slane %v519, %v532
  %v534 = vcombine.high %v526, %v526
  %v535 = vcombine.high %v533, %v533
  %v537 = vunpack.c.l.s4 1966171168
  %v538 = vunpack.c.0.s8 %v537
  %v539 = vlaneseq
  %v540 = vshrl.u32 %v539, 7
  %v541 = vsub.s32 %v538, %v540
  %v542 = vrot.slane %v526, %v541
  %v544 = vunpack.c.l.s4 1966171168
  %v545 = vunpack.c.0.s8 %v544
  %v546 = vlaneseq
  %v547 = vshrl.u32 %v546, 7
  %v548 = vsub.s32 %v545, %v547
  %v549 = vrot.slane %v533, %v548
  %v551 = vunpack.c.l.s4 1966171168
  %v552 = vunpack.c.0.s8 %v551
  %v553 = vlaneseq
  %v554 = vshrl.u32 %v553, 7
  %v555 = vsub.s32 %v552, %v554
  %v556 = vrot.slane %v534, %v555
  %v558 = vunpack.c.l.s4 1966171168
  %v559 = vunpack.c.0.s8 %v558
  %v560 = vlaneseq
  %v561 = vshrl.u32 %v560, 7
  %v562 = vsub.s32 %v559, %v561
  %v563 = vrot.slane %v535, %v562
  %v564 = vcombine.high %v542, %v542
  %v565 = vcombine.high %v549, %v549
  %v566 = vcombine.high %v556, %v556
  %v567 = vcombine.high %v563, %v563
  %v568 = vcombine.high %v150, %v150
  %v570 = vunpack.c.l.s4 1966171168
  %v571 = vunpack.c.0.s8 %v570
  %v572 = vlaneseq
  %v573 = vshrl.u32 %v572, 7
  %v574 = vsub.s32 %v571, %v573
  %v575 = vrot.slane %v150, %v574
  %v577 = vunpack.c.l.s4 1966171168
  %v578 = vunpack.c.0.s8 %v577
  %v579 = vlaneseq
  %v580 = vshrl.u32 %v579, 7
  %v581 = vsub.s32 %v578, %v580
  %v582 = vrot.slane %v568, %v581
  %v583 = vcombine.high %v575, %v575
  %v584 = vcombine.high %v582, %v582
  %v586 = vunpack.c.l.s4 1966171168
  %v587 = vunpack.c.0.s8 %v586
  %v588 = vlaneseq
  %v589 = vshrl.u32 %v588, 7
  %v590 = vsub.s32 %v587, %v589
  %v591 = vrot.slane %v575, %v590
  %v593 = vunpack.c.l.s4 1966171168
  %v594 = vunpack.c.0.s8 %v593
  %v595 = vlaneseq
  %v596 = vshrl.u32 %v595, 7
  %v597 = vsub.s32 %v594, %v596
  %v598 = vrot.slane %v582, %v597
  %v600 = vunpack.c.l.s4 1966171168
  %v601 = vunpack.c.0.s8 %v600
  %v602 = vlaneseq
  %v603 = vshrl.u32 %v602, 7
  %v604 = vsub.s32 %v601, %v603
  %v605 = vrot.slane %v583, %v604
  %v607 = vunpack.c.l.s4 1966171168
  %v608 = vunpack.c.0.s8 %v607
  %v609 = vlaneseq
  %v610 = vshrl.u32 %v609, 7
  %v611 = vsub.s32 %v608, %v610
  %v612 = vrot.slane %v584, %v611
  %v613 = vcombine.high %v591, %v591
  %v614 = vcombine.high %v598, %v598
  %v615 = vcombine.high %v605, %v605
  %v616 = vcombine.high %v612, %v612
  %v617 = vlaneseq
  %v618 = vshrl.u32 %v617, 7
  %v619 = vsub.s32 0, %v618
  %v620 = vrot.slane %v248, %v619
  %v621 = vlaneseq
  %v622 = vshrl.u32 %v621, 7
  %v623 = vsub.s32 0, %v622
  %v624 = vrot.slane %v262, %v623
  %v625 = vlaneseq
  %v626 = vshrl.u32 %v625, 7
  %v627 = vsub.s32 0, %v626
  %v628 = vrot.slane %v270, %v627
  %v629 = vlaneseq
  %v630 = vshrl.u32 %v629, 7
  %v631 = vsub.s32 0, %v630
  %v632 = vrot.slane %v272, %v631
  %v633 = vlaneseq
  %v634 = vshrl.u32 %v633, 7
  %v635 = vsub.s32 0, %v634
  %v636 = vrot.slane %v255, %v635
  %v637 = vlaneseq
  %v638 = vshrl.u32 %v637, 7
  %v639 = vsub.s32 0, %v638
  %v640 = vrot.slane %v269, %v639
  %v641 = vlaneseq
  %v642 = vshrl.u32 %v641, 7
  %v643 = vsub.s32 0, %v642
  %v644 = vrot.slane %v271, %v643
  %v645 = vlaneseq
  %v646 = vshrl.u32 %v645, 7
  %v647 = vsub.s32 0, %v646
  %v648 = vrot.slane %v273, %v647
  %v649 = vlaneseq
  %v650 = vshrl.u32 %v649, 7
  %v651 = vsub.s32 0, %v650
  %v652 = vrot.slane %v297, %v651
  %v653 = vlaneseq
  %v654 = vshrl.u32 %v653, 7
  %v655 = vsub.s32 0, %v654
  %v656 = vrot.slane %v311, %v655
  %v657 = vlaneseq
  %v658 = vshrl.u32 %v657, 7
  %v659 = vsub.s32 0, %v658
  %v660 = vrot.slane %v319, %v659
  %v661 = vlaneseq
  %v662 = vshrl.u32 %v661, 7
  %v663 = vsub.s32 0, %v662
  %v664 = vrot.slane %v321, %v663
  %v665 = vlaneseq
  %v666 = vshrl.u32 %v665, 7
  %v667 = vsub.s32 0, %v666
  %v668 = vrot.slane %v304, %v667
  %v669 = vlaneseq
  %v670 = vshrl.u32 %v669, 7
  %v671 = vsub.s32 0, %v670
  %v672 = vrot.slane %v318, %v671
  %v673 = vlaneseq
  %v674 = vshrl.u32 %v673, 7
  %v675 = vsub.s32 0, %v674
  %v676 = vrot.slane %v320, %v675
  %v677 = vlaneseq
  %v678 = vshrl.u32 %v677, 7
  %v679 = vsub.s32 0, %v678
  %v680 = vrot.slane %v322, %v679
  %v681 = vlaneseq
  %v682 = vshrl.u32 %v681, 7
  %v683 = vsub.s32 0, %v682
  %v684 = vrot.slane %v346, %v683
  %v685 = vlaneseq
  %v686 = vshrl.u32 %v685, 7
  %v687 = vsub.s32 0, %v686
  %v688 = vrot.slane %v360, %v687
  %v689 = vlaneseq
  %v690 = vshrl.u32 %v689, 7
  %v691 = vsub.s32 0, %v690
  %v692 = vrot.slane %v368, %v691
  %v693 = vlaneseq
  %v694 = vshrl.u32 %v693, 7
  %v695 = vsub.s32 0, %v694
  %v696 = vrot.slane %v370, %v695
  %v697 = vlaneseq
  %v698 = vshrl.u32 %v697, 7
  %v699 = vsub.s32 0, %v698
  %v700 = vrot.slane %v353, %v699
  %v701 = vlaneseq
  %v702 = vshrl.u32 %v701, 7
  %v703 = vsub.s32 0, %v702
  %v704 = vrot.slane %v367, %v703
  %v705 = vlaneseq
  %v706 = vshrl.u32 %v705, 7
  %v707 = vsub.s32 0, %v706
  %v708 = vrot.slane %v369, %v707
  %v709 = vlaneseq
  %v710 = vshrl.u32 %v709, 7
  %v711 = vsub.s32 0, %v710
  %v712 = vrot.slane %v371, %v711
  %v713 = vlaneseq
  %v714 = vshrl.u32 %v713, 7
  %v715 = vsub.s32 0, %v714
  %v716 = vrot.slane %v395, %v715
  %v717 = vlaneseq
  %v718 = vshrl.u32 %v717, 7
  %v719 = vsub.s32 0, %v718
  %v720 = vrot.slane %v409, %v719
  %v721 = vlaneseq
  %v722 = vshrl.u32 %v721, 7
  %v723 = vsub.s32 0, %v722
  %v724 = vrot.slane %v417, %v723
  %v725 = vlaneseq
  %v726 = vshrl.u32 %v725, 7
  %v727 = vsub.s32 0, %v726
  %v728 = vrot.slane %v419, %v727
  %v729 = vlaneseq
  %v730 = vshrl.u32 %v729, 7
  %v731 = vsub.s32 0, %v730
  %v732 = vrot.slane %v402, %v731
  %v733 = vlaneseq
  %v734 = vshrl.u32 %v733, 7
  %v735 = vsub.s32 0, %v734
  %v736 = vrot.slane %v416, %v735
  %v737 = vlaneseq
  %v738 = vshrl.u32 %v737, 7
  %v739 = vsub.s32 0, %v738
  %v740 = vrot.slane %v418, %v739
  %v741 = vlaneseq
  %v742 = vshrl.u32 %v741, 7
  %v743 = vsub.s32 0, %v742
  %v744 = vrot.slane %v420, %v743
  %v745 = vlaneseq
  %v746 = vshrl.u32 %v745, 7
  %v747 = vsub.s32 0, %v746
  %v748 = vrot.slane %v444, %v747
  %v749 = vlaneseq
  %v750 = vshrl.u32 %v749, 7
  %v751 = vsub.s32 0, %v750
  %v752 = vrot.slane %v458, %v751
  %v753 = vlaneseq
  %v754 = vshrl.u32 %v753, 7
  %v755 = vsub.s32 0, %v754
  %v756 = vrot.slane %v466, %v755
  %v757 = vlaneseq
  %v758 = vshrl.u32 %v757, 7
  %v759 = vsub.s32 0, %v758
  %v760 = vrot.slane %v468, %v759
  %v761 = vlaneseq
  %v762 = vshrl.u32 %v761, 7
  %v763 = vsub.s32 0, %v762
  %v764 = vrot.slane %v451, %v763
  %v765 = vlaneseq
  %v766 = vshrl.u32 %v765, 7
  %v767 = vsub.s32 0, %v766
  %v768 = vrot.slane %v465, %v767
  %v769 = vlaneseq
  %v770 = vshrl.u32 %v769, 7
  %v771 = vsub.s32 0, %v770
  %v772 = vrot.slane %v467, %v771
  %v773 = vlaneseq
  %v774 = vshrl.u32 %v773, 7
  %v775 = vsub.s32 0, %v774
  %v776 = vrot.slane %v469, %v775
  %v777 = vlaneseq
  %v778 = vshrl.u32 %v777, 7
  %v779 = vsub.s32 0, %v778
  %v780 = vrot.slane %v493, %v779
  %v781 = vlaneseq
  %v782 = vshrl.u32 %v781, 7
  %v783 = vsub.s32 0, %v782
  %v784 = vrot.slane %v507, %v783
  %v785 = vlaneseq
  %v786 = vshrl.u32 %v785, 7
  %v787 = vsub.s32 0, %v786
  %v788 = vrot.slane %v515, %v787
  %v789 = vlaneseq
  %v790 = vshrl.u32 %v789, 7
  %v791 = vsub.s32 0, %v790
  %v792 = vrot.slane %v517, %v791
  %v793 = vlaneseq
  %v794 = vshrl.u32 %v793, 7
  %v795 = vsub.s32 0, %v794
  %v796 = vrot.slane %v500, %v795
  %v797 = vlaneseq
  %v798 = vshrl.u32 %v797, 7
  %v799 = vsub.s32 0, %v798
  %v800 = vrot.slane %v514, %v799
  %v801 = vlaneseq
  %v802 = vshrl.u32 %v801, 7
  %v803 = vsub.s32 0, %v802
  %v804 = vrot.slane %v516, %v803
  %v805 = vlaneseq
  %v806 = vshrl.u32 %v805, 7
  %v807 = vsub.s32 0, %v806
  %v808 = vrot.slane %v518, %v807
  %v809 = vlaneseq
  %v810 = vshrl.u32 %v809, 7
  %v811 = vsub.s32 0, %v810
  %v812 = vrot.slane %v542, %v811
  %v813 = vlaneseq
  %v814 = vshrl.u32 %v813, 7
  %v815 = vsub.s32 0, %v814
  %v816 = vrot.slane %v556, %v815
  %v817 = vlaneseq
  %v818 = vshrl.u32 %v817, 7
  %v819 = vsub.s32 0, %v818
  %v820 = vrot.slane %v564, %v819
  %v821 = vlaneseq
  %v822 = vshrl.u32 %v821, 7
  %v823 = vsub.s32 0, %v822
  %v824 = vrot.slane %v566, %v823
  %v825 = vlaneseq
  %v826 = vshrl.u32 %v825, 7
  %v827 = vsub.s32 0, %v826
  %v828 = vrot.slane %v549, %v827
  %v829 = vlaneseq
  %v830 = vshrl.u32 %v829, 7
  %v831 = vsub.s32 0, %v830
  %v832 = vrot.slane %v563, %v831
  %v833 = vlaneseq
  %v834 = vshrl.u32 %v833, 7
  %v835 = vsub.s32 0, %v834
  %v836 = vrot.slane %v565, %v835
  %v837 = vlaneseq
  %v838 = vshrl.u32 %v837, 7
  %v839 = vsub.s32 0, %v838
  %v840 = vrot.slane %v567, %v839
  %v841 = vlaneseq
  %v842 = vshrl.u32 %v841, 7
  %v843 = vsub.s32 0, %v842
  %v844 = vrot.slane %v591, %v843
  %v845 = vlaneseq
  %v846 = vshrl.u32 %v845, 7
  %v847 = vsub.s32 0, %v846
  %v848 = vrot.slane %v605, %v847
  %v849 = vlaneseq
  %v850 = vshrl.u32 %v849, 7
  %v851 = vsub.s32 0, %v850
  %v852 = vrot.slane %v613, %v851
  %v853 = vlaneseq
  %v854 = vshrl.u32 %v853, 7
  %v855 = vsub.s32 0, %v854
  %v856 = vrot.slane %v615, %v855
  %v857 = vlaneseq
  %v858 = vshrl.u32 %v857, 7
  %v859 = vsub.s32 0, %v858
  %v860 = vrot.slane %v598, %v859
  %v861 = vlaneseq
  %v862 = vshrl.u32 %v861, 7
  %v863 = vsub.s32 0, %v862
  %v864 = vrot.slane %v612, %v863
  %v865 = vlaneseq
  %v866 = vshrl.u32 %v865, 7
  %v867 = vsub.s32 0, %v866
  %v868 = vrot.slane %v614, %v867
  %v869 = vlaneseq
  %v870 = vshrl.u32 %v869, 7
  %v871 = vsub.s32 0, %v870
  %v872 = vrot.slane %v616, %v871
  %v937 = vadd.f32 %v153, %v620
  %v938 = vadd.f32 %v154, %v624
  %v939 = vadd.f32 %v155, %v628
  %v940 = vadd.f32 %v156, %v632
  %v941 = vadd.f32 %v157, %v636
  %v942 = vadd.f32 %v158, %v640
  %v943 = vadd.f32 %v159, %v644
  %v944 = vadd.f32 %v160, %v648
  %v945 = vadd.f32 %v161, %v652
  %v946 = vadd.f32 %v162, %v656
  %v947 = vadd.f32 %v163, %v660
  %v948 = vadd.f32 %v164, %v664
  %v949 = vadd.f32 %v165, %v668
  %v950 = vadd.f32 %v166, %v672
  %v951 = vadd.f32 %v167, %v676
  %v952 = vadd.f32 %v168, %v680
  %v953 = vadd.f32 %v169, %v684
  %v954 = vadd.f32 %v170, %v688
  %v955 = vadd.f32 %v171, %v692
  %v956 = vadd.f32 %v172, %v696
  %v957 = vadd.f32 %v173, %v700
  %v958 = vadd.f32 %v174, %v704
  %v959 = vadd.f32 %v175, %v708
  %v960 = vadd.f32 %v176, %v712
  %v961 = vadd.f32 %v177, %v716
  %v962 = vadd.f32 %v178, %v720
  %v963 = vadd.f32 %v179, %v724
  %v964 = vadd.f32 %v180, %v728
  %v965 = vadd.f32 %v181, %v732
  %v966 = vadd.f32 %v182, %v736
  %v967 = vadd.f32 %v183, %v740
  %v968 = vadd.f32 %v184, %v744
  %v969 = vadd.f32 %v185, %v748
  %v970 = vadd.f32 %v186, %v752
  %v971 = vadd.f32 %v187, %v756
  %v972 = vadd.f32 %v188, %v760
  %v973 = vadd.f32 %v189, %v764
  %v974 = vadd.f32 %v190, %v768
  %v975 = vadd.f32 %v191, %v772
  %v976 = vadd.f32 %v192, %v776
  %v977 = vadd.f32 %v193, %v780
  %v978 = vadd.f32 %v194, %v784
  %v979 = vadd.f32 %v195, %v788
  %v980 = vadd.f32 %v196, %v792
  %v981 = vadd.f32 %v197, %v796
  %v982 = vadd.f32 %v198, %v800
  %v983 = vadd.f32 %v199, %v804
  %v984 = vadd.f32 %v200, %v808
  %v985 = vadd.f32 %v201, %v812
  %v986 = vadd.f32 %v202, %v816
  %v987 = vadd.f32 %v203, %v820
  %v988 = vadd.f32 %v204, %v824
  %v989 = vadd.f32 %v205, %v828
  %v990 = vadd.f32 %v206, %v832
  %v991 = vadd.f32 %v207, %v836
  %v992 = vadd.f32 %v208, %v840
  %v993 = vadd.f32 %v209, %v844
  %v994 = vadd.f32 %v210, %v848
  %v995 = vadd.f32 %v211, %v852
  %v996 = vadd.f32 %v212, %v856
  %v997 = vadd.f32 %v213, %v860
  %v998 = vadd.f32 %v214, %v864
  %v999 = vadd.f32 %v215, %v868
  %v1000 = vadd.f32 %v216, %v872
  %vm1001 = vcmask 123904
  %1002 = vst.msk [vmem:[%s3] sm:$0x3] %vm1001, %v937
  %1003 = vst.msk [vmem:[%s3 + $0x2] sm:$0x3] %vm1001, %v938
  %1004 = vst.msk [vmem:[%s3 + $0x4] sm:$0x3] %vm1001, %v939
  %1005 = vst.msk [vmem:[%s3 + $0x6] sm:$0x3] %vm1001, %v940
  %1006 = vst.msk [vmem:[%s3 + $0x8] sm:$0x3] %vm1001, %v941
  %1007 = vst.msk [vmem:[%s3 + $0xa] sm:$0x3] %vm1001, %v942
  %1008 = vst.msk [vmem:[%s3 + $0xc] sm:$0x3] %vm1001, %v943
  %1009 = vst.msk [vmem:[%s3 + $0xe] sm:$0x3] %vm1001, %v944
  %1010 = vst.msk [vmem:[%s3 + $0x10] sm:$0x3] %vm1001, %v945
  %1011 = vst.msk [vmem:[%s3 + $0x12] sm:$0x3] %vm1001, %v946
  %1012 = vst.msk [vmem:[%s3 + $0x14] sm:$0x3] %vm1001, %v947
  %1013 = vst.msk [vmem:[%s3 + $0x16] sm:$0x3] %vm1001, %v948
  %1014 = vst.msk [vmem:[%s3 + $0x18] sm:$0x3] %vm1001, %v949
  %1015 = vst.msk [vmem:[%s3 + $0x1a] sm:$0x3] %vm1001, %v950
  %1016 = vst.msk [vmem:[%s3 + $0x1c] sm:$0x3] %vm1001, %v951
  %1017 = vst.msk [vmem:[%s3 + $0x1e] sm:$0x3] %vm1001, %v952
  %1018 = vst.msk [vmem:[%s3 + $0x20] sm:$0x3] %vm1001, %v953
  %1019 = vst.msk [vmem:[%s3 + $0x22] sm:$0x3] %vm1001, %v954
  %1020 = vst.msk [vmem:[%s3 + $0x24] sm:$0x3] %vm1001, %v955
  %1021 = vst.msk [vmem:[%s3 + $0x26] sm:$0x3] %vm1001, %v956
  %1022 = vst.msk [vmem:[%s3 + $0x28] sm:$0x3] %vm1001, %v957
  %1023 = vst.msk [vmem:[%s3 + $0x2a] sm:$0x3] %vm1001, %v958
  %1024 = vst.msk [vmem:[%s3 + $0x2c] sm:$0x3] %vm1001, %v959
  %1025 = vst.msk [vmem:[%s3 + $0x2e] sm:$0x3] %vm1001, %v960
  %1026 = vst.msk [vmem:[%s3 + $0x30] sm:$0x3] %vm1001, %v961
  %1027 = vst.msk [vmem:[%s3 + $0x32] sm:$0x3] %vm1001, %v962
  %1028 = vst.msk [vmem:[%s3 + $0x34] sm:$0x3] %vm1001, %v963
  %1029 = vst.msk [vmem:[%s3 + $0x36] sm:$0x3] %vm1001, %v964
  %1030 = vst.msk [vmem:[%s3 + $0x38] sm:$0x3] %vm1001, %v965
  %1031 = vst.msk [vmem:[%s3 + $0x3a] sm:$0x3] %vm1001, %v966
  %1032 = vst.msk [vmem:[%s3 + $0x3c] sm:$0x3] %vm1001, %v967
  %1033 = vst.msk [vmem:[%s3 + $0x3e] sm:$0x3] %vm1001, %v968
  %1034 = vst.msk [vmem:[%s3 + $0x40] sm:$0x3] %vm1001, %v969
  %1035 = vst.msk [vmem:[%s3 + $0x42] sm:$0x3] %vm1001, %v970
  %1036 = vst.msk [vmem:[%s3 + $0x44] sm:$0x3] %vm1001, %v971
  %1037 = vst.msk [vmem:[%s3 + $0x46] sm:$0x3] %vm1001, %v972
  %1038 = vst.msk [vmem:[%s3 + $0x48] sm:$0x3] %vm1001, %v973
  %1039 = vst.msk [vmem:[%s3 + $0x4a] sm:$0x3] %vm1001, %v974
  %1040 = vst.msk [vmem:[%s3 + $0x4c] sm:$0x3] %vm1001, %v975
  %1041 = vst.msk [vmem:[%s3 + $0x4e] sm:$0x3] %vm1001, %v976
  %1042 = vst.msk [vmem:[%s3 + $0x50] sm:$0x3] %vm1001, %v977
  %1043 = vst.msk [vmem:[%s3 + $0x52] sm:$0x3] %vm1001, %v978
  %1044 = vst.msk [vmem:[%s3 + $0x54] sm:$0x3] %vm1001, %v979
  %1045 = vst.msk [vmem:[%s3 + $0x56] sm:$0x3] %vm1001, %v980
  %1046 = vst.msk [vmem:[%s3 + $0x58] sm:$0x3] %vm1001, %v981
  %1047 = vst.msk [vmem:[%s3 + $0x5a] sm:$0x3] %vm1001, %v982
  %1048 = vst.msk [vmem:[%s3 + $0x5c] sm:$0x3] %vm1001, %v983
  %1049 = vst.msk [vmem:[%s3 + $0x5e] sm:$0x3] %vm1001, %v984
  %1050 = vst.msk [vmem:[%s3 + $0x60] sm:$0x3] %vm1001, %v985
  %1051 = vst.msk [vmem:[%s3 + $0x62] sm:$0x3] %vm1001, %v986
  %1052 = vst.msk [vmem:[%s3 + $0x64] sm:$0x3] %vm1001, %v987
  %1053 = vst.msk [vmem:[%s3 + $0x66] sm:$0x3] %vm1001, %v988
  %1054 = vst.msk [vmem:[%s3 + $0x68] sm:$0x3] %vm1001, %v989
  %1055 = vst.msk [vmem:[%s3 + $0x6a] sm:$0x3] %vm1001, %v990
  %1056 = vst.msk [vmem:[%s3 + $0x6c] sm:$0x3] %vm1001, %v991
  %1057 = vst.msk [vmem:[%s3 + $0x6e] sm:$0x3] %vm1001, %v992
  %1058 = vst.msk [vmem:[%s3 + $0x70] sm:$0x3] %vm1001, %v993
  %1059 = vst.msk [vmem:[%s3 + $0x72] sm:$0x3] %vm1001, %v994
  %1060 = vst.msk [vmem:[%s3 + $0x74] sm:$0x3] %vm1001, %v995
  %1061 = vst.msk [vmem:[%s3 + $0x76] sm:$0x3] %vm1001, %v996
  %1062 = vst.msk [vmem:[%s3 + $0x78] sm:$0x3] %vm1001, %v997
  %1063 = vst.msk [vmem:[%s3 + $0x7a] sm:$0x3] %vm1001, %v998
  %1064 = vst.msk [vmem:[%s3 + $0x7c] sm:$0x3] %vm1001, %v999
  %1065 = vst.msk [vmem:[%s3 + $0x7e] sm:$0x3] %vm1001, %v1000
  // Predicated region
  $region14: #{tpu_custom_call.1} parent=0 // pred_check
    _
  $region15: #{tpu_custom_call.1} parent=0 // pred_check_branch
    %1067 = sbr.rel (0) target = $region17
  $region16: #{tpu_custom_call.1} parent=0 // pred_region
    _
  $region17: #{tpu_custom_call.1} parent=0 // pred_fallthru
    _
  // Predicated region
  $region18: #{tpu_custom_call.1} parent=0 // pred_check
    _
  $region19: #{tpu_custom_call.1} parent=0 // pred_check_branch
    %1069 = sbr.rel (0) target = $region21
  $region20: #{tpu_custom_call.1} parent=0 // pred_region
    _
  $region21: #{tpu_custom_call.1} parent=0 // pred_fallthru
    _

</llo_original>
